<compile_context>
chip_gen: v7x
topology: tpu7x:2x2x1
jax: 0.10.0
libtpu: 0.0.40
codegen_flags: <defaults>
</compile_context>

<pallas_src>
import functools

import jax
import jax.numpy as jnp
from jax.experimental import pallas as pl
from jax.experimental.pallas import tpu as pltpu

LANES = 128
TARGET_BLOCK_BYTES = 2 * 1024 * 1024  # ~2 MiB per block buffer


def _sigmoid_to_inv_depth_kernel(x_ref, o_ref, *, min_inv_depth, diff_inv_depth,
                                 return_depth):
    x = x_ref[...].astype(jnp.float32)
    inv_depth = min_inv_depth + diff_inv_depth * x
    if return_depth:
        # inv2depth(inv_depth) == 1 / inv_depth.
        # EUP approx reciprocal + one Newton-Raphson step -> ~f32 accuracy
        # without a VALU divide sequence.
        r = pl.reciprocal(inv_depth, approx=True)
        inv_depth = r * (2.0 - inv_depth * r)
    o_ref[...] = inv_depth.astype(o_ref.dtype)


def sigmoid_to_inv_depth(sigmoid, *, min_depth, max_depth, return_depth=False,
                         min_pallas_elems=0):
    """JAX/Pallas equivalent of SigmoidToInvDepth.forward for a single tensor.

    min_pallas_elems: optional threshold below which we skip the Pallas launch
    and let XLA fuse the elementwise math (launch/DMA overhead dominates for
    tiny tensors). Default 0 => always use the Pallas kernel.
    """
    min_inv_depth = 1.0 / max_depth
    max_inv_depth = 1.0 / min_depth
    diff_inv_depth = max_inv_depth - min_inv_depth

    orig_shape = sigmoid.shape
    dtype = sigmoid.dtype
    n = sigmoid.size

    if n < min_pallas_elems:
        inv = min_inv_depth + diff_inv_depth * sigmoid.astype(jnp.float32)
        if return_depth:
            inv = 1.0 / inv
        return inv.astype(dtype)

    flat = sigmoid.reshape(-1)
    pad = (-n) % LANES
    if pad:
        # Only hit when the total element count isn't lane-aligned (rare for
        # NCHW depth maps). Pad with 1.0 so the reciprocal path stays finite;
        # the padded tail is sliced off before reshaping back.
        flat = jnp.concatenate([flat, jnp.ones((pad,), dtype=dtype)])
    rows = flat.shape[0] // LANES
    x2d = flat.reshape(rows, LANES)

    # Pick a row tile that targets ~2 MiB per block buffer (dtype-aware), is a
    # multiple of 8 sublanes, and is clamped for small inputs so the VMEM
    # buffers stay tiny. The ragged last block (rows % row_tile != 0) is
    # handled by Pallas's masked edge-block writeback.
    itemsize = jnp.dtype(dtype).itemsize
    target_rows = max(8, (TARGET_BLOCK_BYTES // (LANES * itemsize)) // 8 * 8)
    row_tile = min(target_rows, -(-rows // 8) * 8)
    grid = (pl.cdiv(rows, row_tile),)

    kernel = functools.partial(
        _sigmoid_to_inv_depth_kernel,
        min_inv_depth=float(min_inv_depth),
        diff_inv_depth=float(diff_inv_depth),
        return_depth=return_depth,
    )

    out2d = pl.pallas_call(
        kernel,
        out_shape=jax.ShapeDtypeStruct((rows, LANES), dtype),
        grid_spec=pltpu.PrefetchScalarGridSpec(
            num_scalar_prefetch=0,
            grid=grid,
            in_specs=[pl.BlockSpec((row_tile, LANES), lambda i: (i, 0))],
            out_specs=pl.BlockSpec((row_tile, LANES), lambda i: (i, 0)),
        ),
        compiler_params=pltpu.CompilerParams(
            dimension_semantics=("parallel",),
            vmem_limit_bytes=16 * 1024 * 1024,
        ),
    )(x2d)

    out = out2d.reshape(-1)
    if pad:
        out = out[:n]
    return out.reshape(orig_shape)


def sigmoid_to_inv_depth_ref(sigmoid, *, min_depth, max_depth, return_depth=False):
    min_inv_depth = 1.0 / max_depth
    max_inv_depth = 1.0 / min_depth
    diff_inv_depth = max_inv_depth - min_inv_depth
    inv_depth = min_inv_depth + diff_inv_depth * sigmoid
    return inv_depth if not return_depth else 1.0 / inv_depth


# TODO(synk): the PyTorch @iterate2 decorator (mapping forward over nested
# lists of tensors) is plain Python structure handling, not a kernel concern;
# apply jax.tree_util.tree_map over this wrapper if that behavior is needed.

if __name__ == "__main__":
    key = jax.random.PRNGKey(0)
    min_depth, max_depth = 0.1, 100.0

    # NCHW sigmoid maps (values in (0, 1)), as produced by a sigmoid head.
    x = jax.nn.sigmoid(jax.random.normal(key, (2, 4, 16, 16), dtype=jnp.float32))

    # inverse-depth output
    out_inv = sigmoid_to_inv_depth(
        x, min_depth=min_depth, max_depth=max_depth, return_depth=False)
    out_inv = jax.block_until_ready(out_inv)
    ref_inv = sigmoid_to_inv_depth_ref(
        x, min_depth=min_depth, max_depth=max_depth, return_depth=False)
    assert out_inv.shape == x.shape and out_inv.dtype == x.dtype
    assert jnp.allclose(out_inv, ref_inv, rtol=1e-6, atol=1e-6)

    # return_depth=True path (inv2depth == reciprocal)
    out_depth = sigmoid_to_inv_depth(
        x, min_depth=min_depth, max_depth=max_depth, return_depth=True)
    out_depth = jax.block_until_ready(out_depth)
    ref_depth = sigmoid_to_inv_depth_ref(
        x, min_depth=min_depth, max_depth=max_depth, return_depth=True)
    assert jnp.allclose(out_depth, ref_depth, rtol=1e-5, atol=1e-5)

    # Non-lane-aligned shape exercises the (rare) tail-padding path.
    x_odd = jax.nn.sigmoid(jax.random.normal(key, (2, 3, 5, 7), dtype=jnp.float32))
    out_odd = sigmoid_to_inv_depth(
        x_odd, min_depth=min_depth, max_depth=max_depth, return_depth=True)
    out_odd = jax.block_until_ready(out_odd)
    ref_odd = sigmoid_to_inv_depth_ref(
        x_odd, min_depth=min_depth, max_depth=max_depth, return_depth=True)
    assert out_odd.shape == x_odd.shape
    assert jnp.allclose(out_odd, ref_odd, rtol=1e-5, atol=1e-5)

    # bf16 path (smaller itemsize -> larger row tile chosen automatically).
    x_bf = jax.nn.sigmoid(
        jax.random.normal(key, (2, 4, 16, 16), dtype=jnp.float32)).astype(jnp.bfloat16)
    out_bf = sigmoid_to_inv_depth(
        x_bf, min_depth=min_depth, max_depth=max_depth, return_depth=False)
    out_bf = jax.block_until_ready(out_bf)
    ref_bf = sigmoid_to_inv_depth_ref(
        x_bf.astype(jnp.float32), min_depth=min_depth, max_depth=max_depth,
        return_depth=False).astype(jnp.bfloat16)
    assert out_bf.dtype == jnp.bfloat16
    assert jnp.allclose(out_bf.astype(jnp.float32), ref_bf.astype(jnp.float32),
                        rtol=1e-2, atol=1e-2)

    print("KERNEL_OK")
</pallas_src>

<mosaic_0001>
module attributes {stable_mosaic.version = 11 : i64} {
  func.func @_sigmoid_to_inv_depth_kernel(%arg0: i32, %arg1: memref<16x128xf32, #tpu.memory_space<vmem>>, %arg2: memref<16x128xf32, #tpu.memory_space<vmem>>) attributes {dimension_semantics = [#tpu.dimension_semantics<parallel>], iteration_bounds = array<i64: 1>, scalar_prefetch = 0 : i64, scratch_operands = 0 : i64, tpu.core_type = #tpu.core_type<tc>, window_params = [{transform_indices = @transform_0, window_bounds = array<i64: 16, 128>}, {transform_indices = @transform_1, window_bounds = array<i64: 16, 128>}]} {
    %c0 = arith.constant 0 : index
    %c0_0 = arith.constant 0 : index
    %0 = vector.load %arg1[%c0, %c0_0] : memref<16x128xf32, #tpu.memory_space<vmem>>, vector<16x128xf32>
    %cst = arith.constant 9.98999977 : f32
    %1 = vector.broadcast %cst : f32 to vector<16x128xf32>
    %2 = arith.mulf %1, %0 : vector<16x128xf32>
    %cst_1 = arith.constant 0.00999999977 : f32
    %3 = vector.broadcast %cst_1 : f32 to vector<16x128xf32>
    %4 = arith.addf %3, %2 : vector<16x128xf32>
    %c0_2 = arith.constant 0 : index
    %c0_3 = arith.constant 0 : index
    %5 = vector.load %arg2[%c0_2, %c0_3] : memref<16x128xf32, #tpu.memory_space<vmem>>, vector<16x128xf32>
    tpu.vector_store %arg2[%c0_2, %c0_3], %4 {strides = array<i32>} : memref<16x128xf32, #tpu.memory_space<vmem>>, vector<16x128xf32>,
    return
  }
  func.func @transform_0(%arg0: i32) -> (i32, i32) {
    %c0_i32 = arith.constant 0 : i32
    %c0_i32_0 = arith.constant 0 : i32
    return %arg0, %c0_i32 : i32, i32
  }
  func.func @transform_1(%arg0: i32) -> (i32, i32) {
    %c0_i32 = arith.constant 0 : i32
    %c0_i32_0 = arith.constant 0 : i32
    return %arg0, %c0_i32 : i32, i32
  }
}

</mosaic_0001>

<llo_original>
// kernel: tpu_custom_call.1
$region0: #{tpu_custom_call.1}
  #allocation0 [shape = 'u32[]', space=smem, size = 0x4, offset = 0x4, fixed_abs, tag = 'smem constant byte address 0x4 - core index']
  #allocation1 [shape = 'u32[144,128]{1,0:T(1,128)}', space=vmem, size = 0x12000, scoped, tag = 'internal scratch']
  %s0 = inlined_call_operand.hbm [shape: f32[16,128], index: 0, kind: input, shape index: {}]
  %s1 = inlined_call_operand.hbm [shape: f32[16,128], index: 1, kind: output, shape index: {}]
  %s2 = sld [smem:[#allocation0]]
  $region18: #{tpu_custom_call.1} parent=0
    _
  %s4 = ssub.s32 1, %s2
  %s5 = scalar_select 0, %s4, %s2
  $region1: #{tpu_custom_call.1} parent=0
    #allocation2 [shape = 'u8[8192]{0}', space=vmem, size = 0x2000, scoped, tag = 'input window, operand 0, single buffered']
    #allocation3 [shape = 's32[1]{0}', space=sflag, size = 0x4, scoped, tag = 'scoped memory for tpu_custom_call.1']
    #allocation4 [shape = 's32[1]{0}', space=sflag, size = 0x4, scoped, tag = 'scoped memory for tpu_custom_call.1']
    #allocation5 [shape = 'u8[8192]{0}', space=vmem, size = 0x2000, scoped, tag = 'output window, operand 0, single buffered']
    %6 = vsyncpa [#allocation3], 0
    %7 = vsyncpa [#allocation4], 0
    // Predicated region
    $region2: #{tpu_custom_call.1} parent=1 // pred_check
      _
    $region3: #{tpu_custom_call.1} parent=1 // pred_check_branch
      %9 = sbr.rel (0) target = $region5
    $region4: #{tpu_custom_call.1} parent=1 // pred_region
      %s11 = ssub.s32 256, 256
      %12 = vsyncadd [#allocation3], %s11
      %s13 = sshll.u32 [#allocation2], 4
      %s14 = int_to_ptr.vmem [resolvable:$true] %s13
      %19 = dma.hbm_to_vmem [thread:$0]  %s0, 256, %s14, [#allocation3], 128, 128, 8
    $region5: #{tpu_custom_call.1} parent=1 // pred_fallthru
      _
    // Predicated region
    $region6: #{tpu_custom_call.1} parent=1 // pred_check
      _
    $region7: #{tpu_custom_call.1} parent=1 // pred_check_branch
      %21 = sbr.rel (0) target = $region9
    $region8: #{tpu_custom_call.1} parent=1 // pred_region
      %22 = dma.done [#allocation3], 256
    $region9: #{tpu_custom_call.1} parent=1 // pred_fallthru
      _
    %v23 = vld [vmem:[#allocation2] sm:$0xff]
    %v24 = vld [vmem:[#allocation2 + $0x8] sm:$0xff]
    %v25 = vmul.f32 %v23, 9.99
    %v26 = vmul.f32 %v24, 9.99
    %v27 = vadd.f32 %v25, 0.01
    %v28 = vadd.f32 %v26, 0.01
    %29 = vst [vmem:[#allocation5] sm:$0xff] %v27
    %30 = vst [vmem:[#allocation5 + $0x8] sm:$0xff] %v28
    // Predicated region
    $region10: #{tpu_custom_call.1} parent=1 // pred_check
      _
    $region11: #{tpu_custom_call.1} parent=1 // pred_check_branch
      %32 = sbr.rel (0) target = $region13
    $region12: #{tpu_custom_call.1} parent=1 // pred_region
      %s34 = ssub.s32 256, 256
      %35 = vsyncadd [#allocation4], %s34
      %s36 = sshll.u32 [#allocation5], 4
      %s37 = int_to_ptr.vmem [resolvable:$true] %s36
      %42 = dma.vmem_to_hbm [thread:$0]  %s37, 256, %s1, [#allocation4], 128, 128, 8
    $region13: #{tpu_custom_call.1} parent=1 // pred_fallthru
      _
    // Predicated region
    $region14: #{tpu_custom_call.1} parent=1 // pred_check
      _
    $region15: #{tpu_custom_call.1} parent=1 // pred_check_branch
      %44 = sbr.rel (0) target = $region17
    $region16: #{tpu_custom_call.1} parent=1 // pred_region
      %45 = dma.done [#allocation4], 256
    $region17: #{tpu_custom_call.1} parent=1 // pred_fallthru
      _
    %46 = vsyncpa [#allocation3], 1
    %47 = vsyncpa [#allocation4], 1

</llo_original>
